<compile_context>
chip_gen: v5e
topology: v5e:2x2
jax: 0.10.0
libtpu: 0.0.40
codegen_flags: <defaults>
</compile_context>

<pallas_src>
import jax
import jax.numpy as jnp
from jax.experimental import pallas as pl
from jax.experimental.pallas import tpu as pltpu


def _round_up(x, m):
    return ((x + m - 1) // m) * m


def _ffn_kernel(x_ref, w1t_ref, w3t_ref, w2t_ref, b1_ref, b3_ref, b2_ref,
                o_ref, acc_ref):
    """One (row-tile, hidden-chunk) step of the SwiGLU MLP."""
    h = pl.program_id(1)

    @pl.when(h == 0)
    def _():
        acc_ref[...] = jnp.zeros_like(acc_ref)

    x = x_ref[...]  # native dtype -> bf16 MXU path when inputs/weights are bf16

    # gate / up projections for this hidden chunk (f32 accumulation on the MXU)
    h1 = jnp.dot(x, w1t_ref[...], preferred_element_type=jnp.float32) + b1_ref[...]
    h3 = jnp.dot(x, w3t_ref[...], preferred_element_type=jnp.float32) + b3_ref[...]

    # SwiGLU in f32: silu(h1) * h3.  sigmoid -> EUP slot, muls -> VPU.
    act = (h1 * jax.nn.sigmoid(h1) * h3).astype(w2t_ref.dtype)

    # partial down projection, accumulated across hidden chunks
    acc_ref[...] += jnp.dot(act, w2t_ref[...], preferred_element_type=jnp.float32)

    @pl.when(h == pl.num_programs(1) - 1)
    def _():
        o_ref[...] = (acc_ref[...] + b2_ref[...]).astype(o_ref.dtype)


def prepare_feed_forward_params(w1, w3, w2, b1, b3, b2):
    """One-time ("load time") layout conversion of the PyTorch nn.Linear params.

    PyTorch nn.Linear weight layout is [out, in]:
      w1/w3: [hidden, in], w2: [out, hidden]  ->  pre-transpose to matmul layout.
    """
    hidden = w1.shape[0]
    out_features = w2.shape[0]
    return dict(
        w1t=jnp.transpose(w1),                                   # [in, hidden]
        w3t=jnp.transpose(w3),                                   # [in, hidden]
        w2t=jnp.transpose(w2),                                   # [hidden, out]
        b1=b1.reshape(1, hidden).astype(jnp.float32),
        b3=b3.reshape(1, hidden).astype(jnp.float32),
        b2=b2.reshape(1, out_features).astype(jnp.float32),
    )


def _estimate_vmem_bytes(tile_m, tile_h, in_f, out_f, x_bytes, w_bytes):
    b = 0
    b += 2 * tile_m * in_f * x_bytes          # x tile (double-buffered)
    b += 2 * in_f * tile_h * w_bytes * 2      # w1t + w3t chunks
    b += 2 * tile_h * out_f * w_bytes         # w2t chunk
    b += 2 * (2 * tile_h + out_f) * 4         # biases (f32)
    b += 2 * tile_m * out_f * x_bytes         # output tile
    b += tile_m * out_f * 4                   # f32 accumulator scratch
    return b


def feed_forward_pallas(x, params, *, tile_m=256, tile_h=512):
    """x: [..., in_features]; params: output of prepare_feed_forward_params."""
    w1t, w3t, w2t = params["w1t"], params["w3t"], params["w2t"]
    b1, b3, b2 = params["b1"], params["b3"], params["b2"]

    orig_shape = x.shape
    in_features, hidden = w1t.shape
    out_features = w2t.shape[1]

    xm = x.reshape(-1, in_features)
    M = xm.shape[0]

    # --- tile-size selection -------------------------------------------------
    # Rows: large tiles keep the MXU fed; clamp for tiny inputs (sublane multiple of 8).
    tile_m = min(tile_m, _round_up(M, 8))
    # Hidden: the module guarantees hidden % 256 == 0; keep tile_h a divisor of hidden.
    if hidden % tile_h != 0:
        tile_h = 256 if hidden % 256 == 0 else hidden
    tile_h = min(tile_h, hidden)

    # Ragged last row tile: zero-pad instead of asserting divisibility.
    m_tiles = pl.cdiv(M, tile_m)
    M_pad = m_tiles * tile_m
    if M_pad != M:
        xm = jnp.pad(xm, ((0, M_pad - M), (0, 0)))

    grid = (m_tiles, hidden // tile_h)
    # NOTE(v7x): for best 2-TC utilization the row axis should have >= 2 iterations;
    # at toy sizes (m_tiles == 1) one core simply idles.

    vmem_limit = _estimate_vmem_bytes(
        tile_m, tile_h, in_features, out_features,
        jnp.dtype(x.dtype).itemsize, jnp.dtype(w1t.dtype).itemsize)
    vmem_limit = min(max(2 * vmem_limit + (2 << 20), 16 << 20), 64 << 20)

    out = pl.pallas_call(
        _ffn_kernel,
        out_shape=jax.ShapeDtypeStruct((M_pad, out_features), x.dtype),
        grid_spec=pltpu.PrefetchScalarGridSpec(
            num_scalar_prefetch=0,
            grid=grid,
            in_specs=[
                pl.BlockSpec((tile_m, in_features), lambda i, h: (i, 0)),     # x rows
                pl.BlockSpec((in_features, tile_h), lambda i, h: (0, h)),     # w1^T chunk
                pl.BlockSpec((in_features, tile_h), lambda i, h: (0, h)),     # w3^T chunk
                pl.BlockSpec((tile_h, out_features), lambda i, h: (h, 0)),    # w2^T chunk
                pl.BlockSpec((1, tile_h), lambda i, h: (0, h)),               # b1 chunk
                pl.BlockSpec((1, tile_h), lambda i, h: (0, h)),               # b3 chunk
                pl.BlockSpec((1, out_features), lambda i, h: (0, 0)),         # b2
            ],
            out_specs=pl.BlockSpec((tile_m, out_features), lambda i, h: (i, 0)),
            scratch_shapes=[pltpu.VMEM((tile_m, out_features), jnp.float32)],
        ),
        compiler_params=pltpu.CompilerParams(
            dimension_semantics=("parallel", "arbitrary"),
            vmem_limit_bytes=int(vmem_limit)),
    )(xm, w1t, w3t, w2t, b1, b3, b2)

    if M_pad != M:
        out = out[:M]
    return out.reshape(*orig_shape[:-1], out_features)


def feed_forward_reference(x, w1, w3, w2, b1, b3, b2):
    """Plain-JAX reference mirroring the PyTorch forward."""
    w1_o = x @ w1.T + b1
    w3_o = x @ w3.T + b3
    act = jax.nn.silu(w1_o) * w3_o
    return act @ w2.T + b2


if __name__ == "__main__":
    # Module config (mirrors FeedForward.__init__ with multiple_of=256):
    in_features = 128
    hidden_features_cfg = 200
    out_features = 128
    multiple_of = 256
    hidden = multiple_of * ((hidden_features_cfg + multiple_of - 1) // multiple_of)  # 256

    batch, seq = 2, 8  # small shapes; M = 16 rows

    key = jax.random.PRNGKey(0)
    kx, k1, k3, k2, kb1, kb3, kb2 = jax.random.split(key, 7)

    x = jax.random.normal(kx, (batch, seq, in_features), dtype=jnp.float32)

    # deterministic synthetic parameters (PyTorch nn.Linear weight layout [out, in])
    scale = 0.02
    w1 = scale * jax.random.normal(k1, (hidden, in_features), dtype=jnp.float32)
    w3 = scale * jax.random.normal(k3, (hidden, in_features), dtype=jnp.float32)
    w2 = scale * jax.random.normal(k2, (out_features, hidden), dtype=jnp.float32)
    b1 = scale * jax.random.normal(kb1, (hidden,), dtype=jnp.float32)
    b3 = scale * jax.random.normal(kb3, (hidden,), dtype=jnp.float32)
    b2 = scale * jax.random.normal(kb2, (out_features,), dtype=jnp.float32)

    # one-time layout conversion ("load time"), not per forward call
    params = prepare_feed_forward_params(w1, w3, w2, b1, b3, b2)

    out = feed_forward_pallas(x, params)
    out = jax.block_until_ready(out)

    ref = feed_forward_reference(x, w1, w3, w2, b1, b3, b2)
    assert out.shape == (batch, seq, out_features)
    assert jnp.allclose(out, ref, atol=1e-4, rtol=1e-4), "mismatch vs reference"

    print("KERNEL_OK")
</pallas_src>

<mosaic_0001>
module attributes {stable_mosaic.version = 11 : i64} {
  func.func @_ffn_kernel(%arg0: i32, %arg1: i32, %arg2: memref<16x128xf32, #tpu.memory_space<vmem>>, %arg3: memref<128x256xf32, #tpu.memory_space<vmem>>, %arg4: memref<128x256xf32, #tpu.memory_space<vmem>>, %arg5: memref<256x128xf32, #tpu.memory_space<vmem>>, %arg6: memref<1x256xf32, #tpu.memory_space<vmem>>, %arg7: memref<1x256xf32, #tpu.memory_space<vmem>>, %arg8: memref<1x128xf32, #tpu.memory_space<vmem>>, %arg9: memref<16x128xf32, #tpu.memory_space<vmem>>, %arg10: memref<16x128xf32, #tpu.memory_space<vmem>>) attributes {dimension_semantics = [#tpu.dimension_semantics<parallel>, #tpu.dimension_semantics<arbitrary>], iteration_bounds = array<i64: 1, 1>, scalar_prefetch = 0 : i64, scratch_operands = 1 : i64, tpu.core_type = #tpu.core_type<tc>, window_params = [{transform_indices = @transform_0, window_bounds = array<i64: 16, 128>}, {transform_indices = @transform_1, window_bounds = array<i64: 128, 256>}, {transform_indices = @transform_2, window_bounds = array<i64: 128, 256>}, {transform_indices = @transform_3, window_bounds = array<i64: 256, 128>}, {transform_indices = @transform_4, window_bounds = array<i64: 1, 256>}, {transform_indices = @transform_5, window_bounds = array<i64: 1, 256>}, {pipeline_mode = #tpu.pipeline_mode<synchronous>, transform_indices = @transform_6, window_bounds = array<i64: 1, 128>}, {transform_indices = @transform_7, window_bounds = array<i64: 16, 128>}]} {
    %c0_i32 = arith.constant 0 : i32
    %0 = arith.cmpi eq, %arg1, %c0_i32 : i32
    %1 = arith.extui %0 : i1 to i32
    %c0_i32_0 = arith.constant 0 : i32
    %2 = arith.cmpi ne, %1, %c0_i32_0 : i32
    scf.if %2 {
      %cst_21 = arith.constant 0.000000e+00 : f32
      %29 = vector.broadcast %cst_21 : f32 to vector<16x128xf32>
      %c0_22 = arith.constant 0 : index
      %c0_23 = arith.constant 0 : index
      %30 = vector.load %arg10[%c0_22, %c0_23] : memref<16x128xf32, #tpu.memory_space<vmem>>, vector<16x128xf32>
      tpu.vector_store %arg10[%c0_22, %c0_23], %29 {strides = array<i32>} : memref<16x128xf32, #tpu.memory_space<vmem>>, vector<16x128xf32>,
    } else {
    }
    %c0 = arith.constant 0 : index
    %c0_1 = arith.constant 0 : index
    %3 = vector.load %arg2[%c0, %c0_1] : memref<16x128xf32, #tpu.memory_space<vmem>>, vector<16x128xf32>
    %c0_2 = arith.constant 0 : index
    %c0_3 = arith.constant 0 : index
    %4 = vector.load %arg3[%c0_2, %c0_3] : memref<128x256xf32, #tpu.memory_space<vmem>>, vector<128x256xf32>
    %cst = arith.constant dense<0.000000e+00> : vector<16x256xf32>
    %5 = tpu.matmul %3, %4, %cst {dimension_numbers = #tpu.dot_dimension_numbers<[1], [0], [0], [1], [0, 0, 1, 1], [], []>} : vector<16x128xf32>, vector<128x256xf32>, vector<16x256xf32> -> vector<16x256xf32>
    %c0_4 = arith.constant 0 : index
    %c0_5 = arith.constant 0 : index
    %6 = vector.load %arg6[%c0_4, %c0_5] : memref<1x256xf32, #tpu.memory_space<vmem>>, vector<1x256xf32>
    %7 = vector.broadcast %6 : vector<1x256xf32> to vector<16x256xf32>
    %8 = arith.addf %5, %7 : vector<16x256xf32>
    %c0_6 = arith.constant 0 : index
    %c0_7 = arith.constant 0 : index
    %9 = vector.load %arg4[%c0_6, %c0_7] : memref<128x256xf32, #tpu.memory_space<vmem>>, vector<128x256xf32>
    %cst_8 = arith.constant dense<0.000000e+00> : vector<16x256xf32>
    %10 = tpu.matmul %3, %9, %cst_8 {dimension_numbers = #tpu.dot_dimension_numbers<[1], [0], [0], [1], [0, 0, 1, 1], [], []>} : vector<16x128xf32>, vector<128x256xf32>, vector<16x256xf32> -> vector<16x256xf32>
    %c0_9 = arith.constant 0 : index
    %c0_10 = arith.constant 0 : index
    %11 = vector.load %arg7[%c0_9, %c0_10] : memref<1x256xf32, #tpu.memory_space<vmem>>, vector<1x256xf32>
    %12 = vector.broadcast %11 : vector<1x256xf32> to vector<16x256xf32>
    %13 = arith.addf %10, %12 : vector<16x256xf32>
    %14 = arith.negf %8 : vector<16x256xf32>
    %15 = math.exp %14 : vector<16x256xf32>
    %cst_11 = arith.constant 1.000000e+00 : f32
    %16 = vector.broadcast %cst_11 : f32 to vector<16x256xf32>
    %17 = arith.addf %16, %15 : vector<16x256xf32>
    %18 = arith.divf %16, %17 : vector<16x256xf32>
    %19 = arith.mulf %8, %18 : vector<16x256xf32>
    %20 = arith.mulf %19, %13 : vector<16x256xf32>
    %c0_12 = arith.constant 0 : index
    %c0_13 = arith.constant 0 : index
    %21 = vector.load %arg10[%c0_12, %c0_13] : memref<16x128xf32, #tpu.memory_space<vmem>>, vector<16x128xf32>
    %c0_14 = arith.constant 0 : index
    %c0_15 = arith.constant 0 : index
    %22 = vector.load %arg5[%c0_14, %c0_15] : memref<256x128xf32, #tpu.memory_space<vmem>>, vector<256x128xf32>
    %cst_16 = arith.constant dense<0.000000e+00> : vector<16x128xf32>
    %23 = tpu.matmul %20, %22, %cst_16 {dimension_numbers = #tpu.dot_dimension_numbers<[1], [0], [0], [1], [0, 0, 1, 1], [], []>} : vector<16x256xf32>, vector<256x128xf32>, vector<16x128xf32> -> vector<16x128xf32>
    %24 = arith.addf %21, %23 : vector<16x128xf32>
    %c0_17 = arith.constant 0 : index
    %c0_18 = arith.constant 0 : index
    %25 = vector.load %arg10[%c0_17, %c0_18] : memref<16x128xf32, #tpu.memory_space<vmem>>, vector<16x128xf32>
    tpu.vector_store %arg10[%c0_17, %c0_18], %24 {strides = array<i32>} : memref<16x128xf32, #tpu.memory_space<vmem>>, vector<16x128xf32>,
    %c0_i32_19 = arith.constant 0 : i32
    %26 = arith.cmpi eq, %arg1, %c0_i32_19 : i32
    %27 = arith.extui %26 : i1 to i32
    %c0_i32_20 = arith.constant 0 : i32
    %28 = arith.cmpi ne, %27, %c0_i32_20 : i32
    scf.if %28 {
      %c0_21 = arith.constant 0 : index
      %c0_22 = arith.constant 0 : index
      %29 = vector.load %arg10[%c0_21, %c0_22] : memref<16x128xf32, #tpu.memory_space<vmem>>, vector<16x128xf32>
      %c0_23 = arith.constant 0 : index
      %c0_24 = arith.constant 0 : index
      %30 = vector.load %arg8[%c0_23, %c0_24] : memref<1x128xf32, #tpu.memory_space<vmem>>, vector<1x128xf32>
      %31 = vector.broadcast %30 : vector<1x128xf32> to vector<16x128xf32>
      %32 = arith.addf %29, %31 : vector<16x128xf32>
      %c0_25 = arith.constant 0 : index
      %c0_26 = arith.constant 0 : index
      %33 = vector.load %arg9[%c0_25, %c0_26] : memref<16x128xf32, #tpu.memory_space<vmem>>, vector<16x128xf32>
      tpu.vector_store %arg9[%c0_25, %c0_26], %32 {strides = array<i32>} : memref<16x128xf32, #tpu.memory_space<vmem>>, vector<16x128xf32>,
    } else {
    }
    return
  }
  func.func @transform_0(%arg0: i32, %arg1: i32) -> (i32, i32) {
    %c0_i32 = arith.constant 0 : i32
    %c0_i32_0 = arith.constant 0 : i32
    return %arg0, %c0_i32 : i32, i32
  }
  func.func @transform_1(%arg0: i32, %arg1: i32) -> (i32, i32) {
    %c0_i32 = arith.constant 0 : i32
    %c0_i32_0 = arith.constant 0 : i32
    return %c0_i32, %arg1 : i32, i32
  }
  func.func @transform_2(%arg0: i32, %arg1: i32) -> (i32, i32) {
    %c0_i32 = arith.constant 0 : i32
    %c0_i32_0 = arith.constant 0 : i32
    return %c0_i32, %arg1 : i32, i32
  }
  func.func @transform_3(%arg0: i32, %arg1: i32) -> (i32, i32) {
    %c0_i32 = arith.constant 0 : i32
    %c0_i32_0 = arith.constant 0 : i32
    return %arg1, %c0_i32 : i32, i32
  }
  func.func @transform_4(%arg0: i32, %arg1: i32) -> (i32, i32) {
    %c0_i32 = arith.constant 0 : i32
    %c0_i32_0 = arith.constant 0 : i32
    return %c0_i32, %arg1 : i32, i32
  }
  func.func @transform_5(%arg0: i32, %arg1: i32) -> (i32, i32) {
    %c0_i32 = arith.constant 0 : i32
    %c0_i32_0 = arith.constant 0 : i32
    return %c0_i32, %arg1 : i32, i32
  }
  func.func @transform_6(%arg0: i32, %arg1: i32) -> (i32, i32) {
    %c0_i32 = arith.constant 0 : i32
    %c0_i32_0 = arith.constant 0 : i32
    %c0_i32_1 = arith.constant 0 : i32
    return %c0_i32, %c0_i32_0 : i32, i32
  }
  func.func @transform_7(%arg0: i32, %arg1: i32) -> (i32, i32) {
    %c0_i32 = arith.constant 0 : i32
    %c0_i32_0 = arith.constant 0 : i32
    return %arg0, %c0_i32 : i32, i32
  }
}

</mosaic_0001>

<llo_original>
// kernel: tpu_custom_call.1
$region0: #{tpu_custom_call.1}
  #allocation0 [shape = 'u32[]', space=smem, size = 0x4, offset = 0x4, fixed_abs, tag = 'smem constant byte address 0x4 - core index']
  #allocation1 [shape = 'u32[72,128]{1,0:T(1,128)}', space=vmem, size = 0x9000, scoped, tag = 'internal scratch']
  #allocation2 [shape = 'f32[16,128]{1,0:T(8,128)}', space=vmem, size = 0x2000, scoped, tag = 'scratch operand']
  %s0 = inlined_call_operand.hbm [shape: f32[16,128], index: 0, kind: input, shape index: {}]
  %s1 = inlined_call_operand.hbm [shape: f32[128,256], index: 1, kind: input, shape index: {}]
  %s2 = inlined_call_operand.hbm [shape: f32[128,256], index: 2, kind: input, shape index: {}]
  %s3 = inlined_call_operand.hbm [shape: f32[256,128], index: 3, kind: input, shape index: {}]
  %s4 = inlined_call_operand.vmem [shape: f32[1,256], index: 4, kind: input, shape index: {}]
  %s5 = inlined_call_operand.vmem [shape: f32[1,256], index: 5, kind: input, shape index: {}]
  %s6 = inlined_call_operand.vmem [shape: f32[1,128], index: 6, kind: input, shape index: {}]
  %s7 = inlined_call_operand.hbm [shape: f32[16,128], index: 7, kind: output, shape index: {}]
  %s8 = sld [smem:[#allocation0]]
  $region62: #{tpu_custom_call.1} parent=0
    _
  %s10 = ssub.s32 1, %s8
  %s11 = scalar_select 0, %s10, %s8
  $region1: #{tpu_custom_call.1} parent=0
    #allocation3 [shape = 'u8[8192]{0}', space=vmem, size = 0x2000, scoped, tag = 'input window, operand 0, single buffered']
    #allocation4 [shape = 's32[1]{0}', space=sflag, size = 0x4, scoped, tag = 'scoped memory for tpu_custom_call.1']
    #allocation5 [shape = 's32[1]{0}', space=sflag, size = 0x4, scoped, tag = 'scoped memory for tpu_custom_call.1']
    #allocation6 [shape = 'u8[131072]{0}', space=vmem, size = 0x20000, scoped, tag = 'input window, operand 1, single buffered']
    #allocation7 [shape = 's32[1]{0}', space=sflag, size = 0x4, scoped, tag = 'scoped memory for tpu_custom_call.1']
    #allocation8 [shape = 'u8[131072]{0}', space=vmem, size = 0x20000, scoped, tag = 'input window, operand 2, single buffered']
    #allocation9 [shape = 'u8[131072]{0}', space=vmem, size = 0x20000, scoped, tag = 'input window, operand 3, single buffered']
    #allocation10 [shape = 's32[1]{0}', space=sflag, size = 0x4, scoped, tag = 'scoped memory for tpu_custom_call.1']
    #allocation11 [shape = 'u8[8192]{0}', space=vmem, size = 0x2000, scoped, tag = 'output window, operand 0, single buffered']
    %12 = vsyncpa [#allocation4], 0
    %13 = vsyncpa [#allocation7], 0
    %14 = vsyncpa [#allocation10], 0
    %15 = vsyncpa [#allocation5], 0
    // Predicated region
    $region2: #{tpu_custom_call.1} parent=1 // pred_check
      _
    $region3: #{tpu_custom_call.1} parent=1 // pred_check_branch
      %17 = sbr.rel (0) target = $region5
    $region4: #{tpu_custom_call.1} parent=1 // pred_region
      %19 = vsyncadd [#allocation4], 0
      %s20 = sshll.u32 %s0, 4
      %s21 = int_to_ptr.hbm [resolvable:$true] %s20
      %s22 = sshll.u32 [#allocation3], 4
      %s23 = int_to_ptr.vmem [resolvable:$true] %s22
      %28 = dma.hbm_to_vmem [thread:$0]  %s21, 256, %s23, [#allocation4], 128, 128, 8
    $region5: #{tpu_custom_call.1} parent=1 // pred_fallthru
      _
    // Predicated region
    $region6: #{tpu_custom_call.1} parent=1 // pred_check
      _
    $region7: #{tpu_custom_call.1} parent=1 // pred_check_branch
      %30 = sbr.rel (0) target = $region9
    $region8: #{tpu_custom_call.1} parent=1 // pred_region
      %32 = vsyncadd [#allocation7], 0
      %s33 = sshll.u32 %s1, 4
      %s34 = int_to_ptr.hbm [resolvable:$true] %s33
      %s35 = sshll.u32 [#allocation6], 4
      %s36 = int_to_ptr.vmem [resolvable:$true] %s35
      %41 = dma.hbm_to_vmem [thread:$0]  %s34, 4096, %s36, [#allocation7], 256, 256, 16
    $region9: #{tpu_custom_call.1} parent=1 // pred_fallthru
      _
    // Predicated region
    $region10: #{tpu_custom_call.1} parent=1 // pred_check
      _
    $region11: #{tpu_custom_call.1} parent=1 // pred_check_branch
      %43 = sbr.rel (0) target = $region13
    $region12: #{tpu_custom_call.1} parent=1 // pred_region
      %45 = vsyncadd [#allocation7], 0
      %s46 = sshll.u32 %s2, 4
      %s47 = int_to_ptr.hbm [resolvable:$true] %s46
      %s48 = sshll.u32 [#allocation8], 4
      %s49 = int_to_ptr.vmem [resolvable:$true] %s48
      %54 = dma.hbm_to_vmem [thread:$0]  %s47, 4096, %s49, [#allocation7], 256, 256, 16
    $region13: #{tpu_custom_call.1} parent=1 // pred_fallthru
      _
    // Predicated region
    $region14: #{tpu_custom_call.1} parent=1 // pred_check
      _
    $region15: #{tpu_custom_call.1} parent=1 // pred_check_branch
      %56 = sbr.rel (0) target = $region17
    $region16: #{tpu_custom_call.1} parent=1 // pred_region
      %58 = vsyncadd [#allocation10], 0
      %s59 = sshll.u32 %s3, 4
      %s60 = int_to_ptr.hbm [resolvable:$true] %s59
      %s61 = sshll.u32 [#allocation9], 4
      %s62 = int_to_ptr.vmem [resolvable:$true] %s61
      %67 = dma.hbm_to_vmem [thread:$0]  %s60, 4096, %s62, [#allocation10], 128, 128, 8
    $region17: #{tpu_custom_call.1} parent=1 // pred_fallthru
      _
    // Predicated region
    $region18: #{tpu_custom_call.1} parent=1 // pred_check
      _
    $region19: #{tpu_custom_call.1} parent=1 // pred_check_branch
      %69 = sbr.rel (0) target = $region21
    $region20: #{tpu_custom_call.1} parent=1 // pred_region
      _
    $region21: #{tpu_custom_call.1} parent=1 // pred_fallthru
      _
    // Predicated region
    $region22: #{tpu_custom_call.1} parent=1 // pred_check
      _
    $region23: #{tpu_custom_call.1} parent=1 // pred_check_branch
      %71 = sbr.rel (0) target = $region25
    $region24: #{tpu_custom_call.1} parent=1 // pred_region
      _
    $region25: #{tpu_custom_call.1} parent=1 // pred_fallthru
      _
    // Predicated region
    $region26: #{tpu_custom_call.1} parent=1 // pred_check
      _
    $region27: #{tpu_custom_call.1} parent=1 // pred_check_branch
      %73 = sbr.rel (0) target = $region29
    $region28: #{tpu_custom_call.1} parent=1 // pred_region
      _
    $region29: #{tpu_custom_call.1} parent=1 // pred_fallthru
      _
    // Predicated region
    $region30: #{tpu_custom_call.1} parent=1 // pred_check
      _
    $region31: #{tpu_custom_call.1} parent=1 // pred_check_branch
      %75 = sbr.rel (0) target = $region33
    $region32: #{tpu_custom_call.1} parent=1 // pred_region
      %77 = dma.done [#allocation4], 256
    $region33: #{tpu_custom_call.1} parent=1 // pred_fallthru
      _
    // Predicated region
    $region34: #{tpu_custom_call.1} parent=1 // pred_check
      _
    $region35: #{tpu_custom_call.1} parent=1 // pred_check_branch
      %79 = sbr.rel (0) target = $region37
    $region36: #{tpu_custom_call.1} parent=1 // pred_region
      %81 = dma.done [#allocation7], 4096
    $region37: #{tpu_custom_call.1} parent=1 // pred_fallthru
      _
    // Predicated region
    $region38: #{tpu_custom_call.1} parent=1 // pred_check
      _
    $region39: #{tpu_custom_call.1} parent=1 // pred_check_branch
      %83 = sbr.rel (0) target = $region41
    $region40: #{tpu_custom_call.1} parent=1 // pred_region
      %85 = dma.done [#allocation7], 4096
    $region41: #{tpu_custom_call.1} parent=1 // pred_fallthru
      _
    // Predicated region
    $region42: #{tpu_custom_call.1} parent=1 // pred_check
      _
    $region43: #{tpu_custom_call.1} parent=1 // pred_check_branch
      %87 = sbr.rel (0) target = $region45
    $region44: #{tpu_custom_call.1} parent=1 // pred_region
      %89 = dma.done [#allocation10], 4096
    $region45: #{tpu_custom_call.1} parent=1 // pred_fallthru
      _
    %p90 = scmp.eq.s32.totalorder 0, 0
    // Predicated region
    $region46: #{tpu_custom_call.1} parent=1 // pred_check
      %p91 = pneg %p90
    $region47: #{tpu_custom_call.1} parent=1 // pred_check_branch
      %93 = sbr.rel (%p91) target = $region49
    $region48: #{tpu_custom_call.1} parent=1 // pred_region
      %94 = vst [vmem:[#allocation2] sm:$0xff] 0.0
      %95 = vst [vmem:[#allocation2 + $0x8] sm:$0xff] 0.0
    $region49: #{tpu_custom_call.1} parent=1 // pred_fallthru
      _
    %v96 = vld [vmem:[#allocation3] sm:$0xff]
    %v97 = vld [vmem:[#allocation3 + $0x8] sm:$0xff]
    %v98 = vld [vmem:[#allocation6] sm:$0xff]
    %v99 = vld [vmem:[#allocation6 + $0x8] sm:$0xff]
    %v100 = vld [vmem:[#allocation6 + $0x10] sm:$0xff]
    %v101 = vld [vmem:[#allocation6 + $0x18] sm:$0xff]
    %v102 = vld [vmem:[#allocation6 + $0x20] sm:$0xff]
    %v103 = vld [vmem:[#allocation6 + $0x28] sm:$0xff]
    %v104 = vld [vmem:[#allocation6 + $0x30] sm:$0xff]
    %v105 = vld [vmem:[#allocation6 + $0x38] sm:$0xff]
    %v106 = vld [vmem:[#allocation6 + $0x40] sm:$0xff]
    %v107 = vld [vmem:[#allocation6 + $0x48] sm:$0xff]
    %v108 = vld [vmem:[#allocation6 + $0x50] sm:$0xff]
    %v109 = vld [vmem:[#allocation6 + $0x58] sm:$0xff]
    %v110 = vld [vmem:[#allocation6 + $0x60] sm:$0xff]
    %v111 = vld [vmem:[#allocation6 + $0x68] sm:$0xff]
    %v112 = vld [vmem:[#allocation6 + $0x70] sm:$0xff]
    %v113 = vld [vmem:[#allocation6 + $0x78] sm:$0xff]
    %v114 = vld [vmem:[#allocation6 + $0x80] sm:$0xff]
    %v115 = vld [vmem:[#allocation6 + $0x88] sm:$0xff]
    %v116 = vld [vmem:[#allocation6 + $0x90] sm:$0xff]
    %v117 = vld [vmem:[#allocation6 + $0x98] sm:$0xff]
    %v118 = vld [vmem:[#allocation6 + $0xa0] sm:$0xff]
    %v119 = vld [vmem:[#allocation6 + $0xa8] sm:$0xff]
    %v120 = vld [vmem:[#allocation6 + $0xb0] sm:$0xff]
    %v121 = vld [vmem:[#allocation6 + $0xb8] sm:$0xff]
    %v122 = vld [vmem:[#allocation6 + $0xc0] sm:$0xff]
    %v123 = vld [vmem:[#allocation6 + $0xc8] sm:$0xff]
    %v124 = vld [vmem:[#allocation6 + $0xd0] sm:$0xff]
    %v125 = vld [vmem:[#allocation6 + $0xd8] sm:$0xff]
    %v126 = vld [vmem:[#allocation6 + $0xe0] sm:$0xff]
    %v127 = vld [vmem:[#allocation6 + $0xe8] sm:$0xff]
    %v128 = vld [vmem:[#allocation6 + $0xf0] sm:$0xff]
    %v129 = vld [vmem:[#allocation6 + $0xf8] sm:$0xff]
    %v130 = vld [vmem:[%s4] sm:$0x3]
    %v132 = vperm.slane %v130, 0
    %v133 = vperm.slane %v130, 1
    %136 = vmatpush.msra.mxu0 %v128
    %137 = vmatpush.msra.mxu0 %v126
    %138 = vmatpush.msra.mxu0 %v124
    %139 = vmatpush.msra.mxu0 %v122
    %140 = vmatpush.msra.mxu0 %v120
    %141 = vmatpush.msra.mxu0 %v118
    %142 = vmatpush.msra.mxu0 %v116
    %143 = vmatpush.msra.mxu0 %v114
    %144 = vmatpush.msra.mxu0 %v112
    %145 = vmatpush.msra.mxu0 %v110
    %146 = vmatpush.msra.mxu0 %v108
    %147 = vmatpush.msra.mxu0 %v106
    %148 = vmatpush.msra.mxu0 %v104
    %149 = vmatpush.msra.mxu0 %v102
    %150 = vmatpush.msra.mxu0 %v100
    %151 = vmatpush.msra.mxu0 %v98
    %152 = vmatmul.f32.gmra.mxu0 %v96
    %v153 = vpop.f32.mrf.mxu0
    %v154 = vadd.f32 %v132, %v153
    %155 = vmatmul.f32.gmra.mxu0 %v97
    %v156 = vpop.f32.mrf.mxu0
    %v157 = vadd.f32 %v132, %v156
    %158 = vdwg.mxu0
    %159 = vmatpush.msra.mxu0 %v129
    %160 = vmatpush.msra.mxu0 %v127
    %161 = vmatpush.msra.mxu0 %v125
    %162 = vmatpush.msra.mxu0 %v123
    %163 = vmatpush.msra.mxu0 %v121
    %164 = vmatpush.msra.mxu0 %v119
    %165 = vmatpush.msra.mxu0 %v117
    %166 = vmatpush.msra.mxu0 %v115
    %167 = vmatpush.msra.mxu0 %v113
    %168 = vmatpush.msra.mxu0 %v111
    %169 = vmatpush.msra.mxu0 %v109
    %170 = vmatpush.msra.mxu0 %v107
    %171 = vmatpush.msra.mxu0 %v105
    %172 = vmatpush.msra.mxu0 %v103
    %173 = vmatpush.msra.mxu0 %v101
    %174 = vmatpush.msra.mxu0 %v99
    %175 = vmatmul.f32.gmra.mxu0 %v96
    %v176 = vpop.f32.mrf.mxu0
    %v177 = vadd.f32 %v133, %v176
    %178 = vmatmul.f32.gmra.mxu0 %v97
    %v179 = vpop.f32.mrf.mxu0
    %v180 = vadd.f32 %v133, %v179
    %181 = vdwg.mxu0
    %v182 = vld [vmem:[#allocation8] sm:$0xff]
    %v183 = vld [vmem:[#allocation8 + $0x8] sm:$0xff]
    %v184 = vld [vmem:[#allocation8 + $0x10] sm:$0xff]
    %v185 = vld [vmem:[#allocation8 + $0x18] sm:$0xff]
    %v186 = vld [vmem:[#allocation8 + $0x20] sm:$0xff]
    %v187 = vld [vmem:[#allocation8 + $0x28] sm:$0xff]
    %v188 = vld [vmem:[#allocation8 + $0x30] sm:$0xff]
    %v189 = vld [vmem:[#allocation8 + $0x38] sm:$0xff]
    %v190 = vld [vmem:[#allocation8 + $0x40] sm:$0xff]
    %v191 = vld [vmem:[#allocation8 + $0x48] sm:$0xff]
    %v192 = vld [vmem:[#allocation8 + $0x50] sm:$0xff]
    %v193 = vld [vmem:[#allocation8 + $0x58] sm:$0xff]
    %v194 = vld [vmem:[#allocation8 + $0x60] sm:$0xff]
    %v195 = vld [vmem:[#allocation8 + $0x68] sm:$0xff]
    %v196 = vld [vmem:[#allocation8 + $0x70] sm:$0xff]
    %v197 = vld [vmem:[#allocation8 + $0x78] sm:$0xff]
    %v198 = vld [vmem:[#allocation8 + $0x80] sm:$0xff]
    %v199 = vld [vmem:[#allocation8 + $0x88] sm:$0xff]
    %v200 = vld [vmem:[#allocation8 + $0x90] sm:$0xff]
    %v201 = vld [vmem:[#allocation8 + $0x98] sm:$0xff]
    %v202 = vld [vmem:[#allocation8 + $0xa0] sm:$0xff]
    %v203 = vld [vmem:[#allocation8 + $0xa8] sm:$0xff]
    %v204 = vld [vmem:[#allocation8 + $0xb0] sm:$0xff]
    %v205 = vld [vmem:[#allocation8 + $0xb8] sm:$0xff]
    %v206 = vld [vmem:[#allocation8 + $0xc0] sm:$0xff]
    %v207 = vld [vmem:[#allocation8 + $0xc8] sm:$0xff]
    %v208 = vld [vmem:[#allocation8 + $0xd0] sm:$0xff]
    %v209 = vld [vmem:[#allocation8 + $0xd8] sm:$0xff]
    %v210 = vld [vmem:[#allocation8 + $0xe0] sm:$0xff]
    %v211 = vld [vmem:[#allocation8 + $0xe8] sm:$0xff]
    %v212 = vld [vmem:[#allocation8 + $0xf0] sm:$0xff]
    %v213 = vld [vmem:[#allocation8 + $0xf8] sm:$0xff]
    %v214 = vld [vmem:[%s5] sm:$0x3]
    %v216 = vperm.slane %v214, 0
    %v217 = vperm.slane %v214, 1
    %220 = vmatpush.msra.mxu0 %v212
    %221 = vmatpush.msra.mxu0 %v210
    %222 = vmatpush.msra.mxu0 %v208
    %223 = vmatpush.msra.mxu0 %v206
    %224 = vmatpush.msra.mxu0 %v204
    %225 = vmatpush.msra.mxu0 %v202
    %226 = vmatpush.msra.mxu0 %v200
    %227 = vmatpush.msra.mxu0 %v198
    %228 = vmatpush.msra.mxu0 %v196
    %229 = vmatpush.msra.mxu0 %v194
    %230 = vmatpush.msra.mxu0 %v192
    %231 = vmatpush.msra.mxu0 %v190
    %232 = vmatpush.msra.mxu0 %v188
    %233 = vmatpush.msra.mxu0 %v186
    %234 = vmatpush.msra.mxu0 %v184
    %235 = vmatpush.msra.mxu0 %v182
    %236 = vmatmul.f32.gmra.mxu0 %v96
    %v237 = vpop.f32.mrf.mxu0
    %v238 = vadd.f32 %v216, %v237
    %239 = vmatmul.f32.gmra.mxu0 %v97
    %v240 = vpop.f32.mrf.mxu0
    %v241 = vadd.f32 %v216, %v240
    %242 = vdwg.mxu0
    %243 = vmatpush.msra.mxu0 %v213
    %244 = vmatpush.msra.mxu0 %v211
    %245 = vmatpush.msra.mxu0 %v209
    %246 = vmatpush.msra.mxu0 %v207
    %247 = vmatpush.msra.mxu0 %v205
    %248 = vmatpush.msra.mxu0 %v203
    %249 = vmatpush.msra.mxu0 %v201
    %250 = vmatpush.msra.mxu0 %v199
    %251 = vmatpush.msra.mxu0 %v197
    %252 = vmatpush.msra.mxu0 %v195
    %253 = vmatpush.msra.mxu0 %v193
    %254 = vmatpush.msra.mxu0 %v191
    %255 = vmatpush.msra.mxu0 %v189
    %256 = vmatpush.msra.mxu0 %v187
    %257 = vmatpush.msra.mxu0 %v185
    %258 = vmatpush.msra.mxu0 %v183
    %259 = vmatmul.f32.gmra.mxu0 %v96
    %v260 = vpop.f32.mrf.mxu0
    %v261 = vadd.f32 %v217, %v260
    %262 = vmatmul.f32.gmra.mxu0 %v97
    %v263 = vpop.f32.mrf.mxu0
    %v264 = vadd.f32 %v217, %v263
    %265 = vdwg.mxu0
    %v266 = vxor.u32 %v154, 2147483648
    %v267 = vxor.u32 %v177, 2147483648
    %v268 = vxor.u32 %v157, 2147483648
    %v269 = vxor.u32 %v180, 2147483648
    %v270 = vmul.f32 %v266, 1.442695
    %v271 = vpow.pop %v270
    %v272 = vmul.f32 %v267, 1.442695
    %v273 = vpow.pop %v272
    %v274 = vmul.f32 %v268, 1.442695
    %v275 = vpow.pop %v274
    %v276 = vmul.f32 %v269, 1.442695
    %v277 = vpow.pop %v276
    %v278 = vadd.f32 %v271, 1.0
    %v279 = vadd.f32 %v273, 1.0
    %v280 = vadd.f32 %v275, 1.0
    %v281 = vadd.f32 %v277, 1.0
    %v282 = vrcp.pop %v278
    %v283 = vmul.f32 %v278, %v282
    %v284 = vsub.f32 1.0, %v283
    %v285 = vmul.f32 %v282, %v284
    %v286 = vadd.f32 %v282, %v285
    %vm287 = vweird.f32 %v278
    %vm288 = vweird.f32 %v282
    %vm289 = vmor %vm287, %vm288
    %v290 = vsel %vm289, %v282, %v286
    %v291 = vand.u32 2147483647, %v278
    %vm292 = vcmp.eq.f32.partialorder %v291, 8.507059e+37
    %v293 = vand.u32 %v278, 2147483648
    %v294 = vor.u32 1.1754944e-38, %v293
    %v295 = vsel %vm292, %v294, %v290
    %v296 = vmul.f32 1.0, %v295
    %v297 = vrcp.pop %v279
    %v298 = vmul.f32 %v279, %v297
    %v299 = vsub.f32 1.0, %v298
    %v300 = vmul.f32 %v297, %v299
    %v301 = vadd.f32 %v297, %v300
    %vm302 = vweird.f32 %v279
    %vm303 = vweird.f32 %v297
    %vm304 = vmor %vm302, %vm303
    %v305 = vsel %vm304, %v297, %v301
    %v306 = vand.u32 2147483647, %v279
    %vm307 = vcmp.eq.f32.partialorder %v306, 8.507059e+37
    %v308 = vand.u32 %v279, 2147483648
    %v309 = vor.u32 1.1754944e-38, %v308
    %v310 = vsel %vm307, %v309, %v305
    %v311 = vmul.f32 1.0, %v310
    %v312 = vrcp.pop %v280
    %v313 = vmul.f32 %v280, %v312
    %v314 = vsub.f32 1.0, %v313
    %v315 = vmul.f32 %v312, %v314
    %v316 = vadd.f32 %v312, %v315
    %vm317 = vweird.f32 %v280
    %vm318 = vweird.f32 %v312
    %vm319 = vmor %vm317, %vm318
    %v320 = vsel %vm319, %v312, %v316
    %v321 = vand.u32 2147483647, %v280
    %vm322 = vcmp.eq.f32.partialorder %v321, 8.507059e+37
    %v323 = vand.u32 %v280, 2147483648
    %v324 = vor.u32 1.1754944e-38, %v323
    %v325 = vsel %vm322, %v324, %v320
    %v326 = vmul.f32 1.0, %v325
    %v327 = vrcp.pop %v281
    %v328 = vmul.f32 %v281, %v327
    %v329 = vsub.f32 1.0, %v328
    %v330 = vmul.f32 %v327, %v329
    %v331 = vadd.f32 %v327, %v330
    %vm332 = vweird.f32 %v281
    %vm333 = vweird.f32 %v327
    %vm334 = vmor %vm332, %vm333
    %v335 = vsel %vm334, %v327, %v331
    %v336 = vand.u32 2147483647, %v281
    %vm337 = vcmp.eq.f32.partialorder %v336, 8.507059e+37
    %v338 = vand.u32 %v281, 2147483648
    %v339 = vor.u32 1.1754944e-38, %v338
    %v340 = vsel %vm337, %v339, %v335
    %v341 = vmul.f32 1.0, %v340
    %v342 = vmul.f32 %v154, %v296
    %v343 = vmul.f32 %v177, %v311
    %v344 = vmul.f32 %v157, %v326
    %v345 = vmul.f32 %v180, %v341
    %v346 = vmul.f32 %v342, %v238
    %v347 = vmul.f32 %v343, %v261
    %v348 = vmul.f32 %v344, %v241
    %v349 = vmul.f32 %v345, %v264
    %v350 = vld [vmem:[#allocation2] sm:$0xff]
    %v351 = vld [vmem:[#allocation2 + $0x8] sm:$0xff]
    %v352 = vld [vmem:[#allocation9] sm:$0xff]
    %v353 = vld [vmem:[#allocation9 + $0x8] sm:$0xff]
    %v354 = vld [vmem:[#allocation9 + $0x10] sm:$0xff]
    %v355 = vld [vmem:[#allocation9 + $0x18] sm:$0xff]
    %v356 = vld [vmem:[#allocation9 + $0x20] sm:$0xff]
    %v357 = vld [vmem:[#allocation9 + $0x28] sm:$0xff]
    %v358 = vld [vmem:[#allocation9 + $0x30] sm:$0xff]
    %v359 = vld [vmem:[#allocation9 + $0x38] sm:$0xff]
    %v360 = vld [vmem:[#allocation9 + $0x40] sm:$0xff]
    %v361 = vld [vmem:[#allocation9 + $0x48] sm:$0xff]
    %v362 = vld [vmem:[#allocation9 + $0x50] sm:$0xff]
    %v363 = vld [vmem:[#allocation9 + $0x58] sm:$0xff]
    %v364 = vld [vmem:[#allocation9 + $0x60] sm:$0xff]
    %v365 = vld [vmem:[#allocation9 + $0x68] sm:$0xff]
    %v366 = vld [vmem:[#allocation9 + $0x70] sm:$0xff]
    %v367 = vld [vmem:[#allocation9 + $0x78] sm:$0xff]
    %v368 = vld [vmem:[#allocation9 + $0x80] sm:$0xff]
    %v369 = vld [vmem:[#allocation9 + $0x88] sm:$0xff]
    %v370 = vld [vmem:[#allocation9 + $0x90] sm:$0xff]
    %v371 = vld [vmem:[#allocation9 + $0x98] sm:$0xff]
    %v372 = vld [vmem:[#allocation9 + $0xa0] sm:$0xff]
    %v373 = vld [vmem:[#allocation9 + $0xa8] sm:$0xff]
    %v374 = vld [vmem:[#allocation9 + $0xb0] sm:$0xff]
    %v375 = vld [vmem:[#allocation9 + $0xb8] sm:$0xff]
    %v376 = vld [vmem:[#allocation9 + $0xc0] sm:$0xff]
    %v377 = vld [vmem:[#allocation9 + $0xc8] sm:$0xff]
    %v378 = vld [vmem:[#allocation9 + $0xd0] sm:$0xff]
    %v379 = vld [vmem:[#allocation9 + $0xd8] sm:$0xff]
    %v380 = vld [vmem:[#allocation9 + $0xe0] sm:$0xff]
    %v381 = vld [vmem:[#allocation9 + $0xe8] sm:$0xff]
    %v382 = vld [vmem:[#allocation9 + $0xf0] sm:$0xff]
    %v383 = vld [vmem:[#allocation9 + $0xf8] sm:$0xff]
    %384 = vmatpush.msra.mxu0 %v367
    %385 = vmatpush.msra.mxu0 %v366
    %386 = vmatpush.msra.mxu0 %v365
    %387 = vmatpush.msra.mxu0 %v364
    %388 = vmatpush.msra.mxu0 %v363
    %389 = vmatpush.msra.mxu0 %v362
    %390 = vmatpush.msra.mxu0 %v361
    %391 = vmatpush.msra.mxu0 %v360
    %392 = vmatpush.msra.mxu0 %v359
    %393 = vmatpush.msra.mxu0 %v358
    %394 = vmatpush.msra.mxu0 %v357
    %395 = vmatpush.msra.mxu0 %v356
    %396 = vmatpush.msra.mxu0 %v355
    %397 = vmatpush.msra.mxu0 %v354
    %398 = vmatpush.msra.mxu0 %v353
    %399 = vmatpush.msra.mxu0 %v352
    %400 = vmatmul.f32.gmra.mxu0 %v346
    %v401 = vpop.f32.mrf.mxu0
    %v402 = vadd.f32 0.0, %v401
    %403 = vmatmul.f32.gmra.mxu0 %v348
    %v404 = vpop.f32.mrf.mxu0
    %v405 = vadd.f32 0.0, %v404
    %406 = vdwg.mxu0
    %407 = vmatpush.msra.mxu0 %v383
    %408 = vmatpush.msra.mxu0 %v382
    %409 = vmatpush.msra.mxu0 %v381
    %410 = vmatpush.msra.mxu0 %v380
    %411 = vmatpush.msra.mxu0 %v379
    %412 = vmatpush.msra.mxu0 %v378
    %413 = vmatpush.msra.mxu0 %v377
    %414 = vmatpush.msra.mxu0 %v376
    %415 = vmatpush.msra.mxu0 %v375
    %416 = vmatpush.msra.mxu0 %v374
    %417 = vmatpush.msra.mxu0 %v373
    %418 = vmatpush.msra.mxu0 %v372
    %419 = vmatpush.msra.mxu0 %v371
    %420 = vmatpush.msra.mxu0 %v370
    %421 = vmatpush.msra.mxu0 %v369
    %422 = vmatpush.msra.mxu0 %v368
    %423 = vmatmul.f32.gmra.mxu0 %v347
    %v424 = vpop.f32.mrf.mxu0
    %v425 = vadd.f32 %v402, %v424
    %426 = vmatmul.f32.gmra.mxu0 %v349
    %v427 = vpop.f32.mrf.mxu0
    %v428 = vadd.f32 %v405, %v427
    %429 = vdwg.mxu0
    %v430 = vadd.f32 %v350, %v425
    %v431 = vadd.f32 %v351, %v428
    %432 = vst [vmem:[#allocation2] sm:$0xff] %v430
    %433 = vst [vmem:[#allocation2 + $0x8] sm:$0xff] %v431
    // Predicated region
    $region50: #{tpu_custom_call.1} parent=1 // pred_check
      %p434 = pneg %p90
    $region51: #{tpu_custom_call.1} parent=1 // pred_check_branch
      %436 = sbr.rel (%p434) target = $region53
    $region52: #{tpu_custom_call.1} parent=1 // pred_region
      %v437 = vld [vmem:[#allocation2] sm:$0xff]
      %v438 = vld [vmem:[#allocation2 + $0x8] sm:$0xff]
      %v439 = vld [vmem:[%s6] sm:$0x1]
      %v441 = vperm.slane %v439, 0
      %v443 = vadd.f32 %v437, %v441
      %v444 = vadd.f32 %v438, %v441
      %445 = vst [vmem:[#allocation11] sm:$0xff] %v443
      %446 = vst [vmem:[#allocation11 + $0x8] sm:$0xff] %v444
    $region53: #{tpu_custom_call.1} parent=1 // pred_fallthru
      _
    // Predicated region
    $region54: #{tpu_custom_call.1} parent=1 // pred_check
      _
    $region55: #{tpu_custom_call.1} parent=1 // pred_check_branch
      %448 = sbr.rel (0) target = $region57
    $region56: #{tpu_custom_call.1} parent=1 // pred_region
      %450 = vsyncadd [#allocation5], 0
      %s451 = sshll.u32 [#allocation11], 4
      %s452 = int_to_ptr.vmem [resolvable:$true] %s451
      %s453 = sshll.u32 %s7, 4
      %s454 = int_to_ptr.hbm [resolvable:$true] %s453
      %459 = dma.vmem_to_hbm [thread:$0]  %s452, 256, %s454, [#allocation5], 128, 128, 8
    $region57: #{tpu_custom_call.1} parent=1 // pred_fallthru
      _
    // Predicated region
    $region58: #{tpu_custom_call.1} parent=1 // pred_check
      _
    $region59: #{tpu_custom_call.1} parent=1 // pred_check_branch
      %461 = sbr.rel (0) target = $region61
    $region60: #{tpu_custom_call.1} parent=1 // pred_region
      %463 = dma.done [#allocation5], 256
    $region61: #{tpu_custom_call.1} parent=1 // pred_fallthru
      _
    %464 = vsyncpa [#allocation4], 1
    %465 = vsyncpa [#allocation7], 1
    %466 = vsyncpa [#allocation10], 1
    %467 = vsyncpa [#allocation5], 1

</llo_original>
